<compile_context>
chip_gen: v5e
topology: v5e:2x2
jax: 0.10.0
libtpu: 0.0.40
codegen_flags: <defaults>
</compile_context>

<pallas_src>
import jax
import jax.numpy as jnp
from jax.experimental import pallas as pl
from jax.experimental.pallas import tpu as pltpu


def _make_conv1x1_relu_kernel(c_in, c_out):
    def kernel(w_ref, b_ref, x_ref, o_ref):
        # w_ref: (c_out, c_in) f32 in SMEM   b_ref: (c_out,) f32 in SMEM
        # x_ref: (1, c_in, TW) VMEM          o_ref: (1, c_out, TW) VMEM
        x = x_ref[...]                                   # (1, c_in, TW)
        rows = []
        for c in range(c_out):                           # fully unrolled (3x3=9 FMAs)
            acc = x[:, 0:1, :] * w_ref[c, 0]
            for k in range(1, c_in):
                acc = acc + x[:, k:k + 1, :] * w_ref[c, k]
            rows.append(acc + b_ref[c])
        y = jnp.concatenate(rows, axis=1) if c_out > 1 else rows[0]
        o_ref[...] = jnp.maximum(y, 0.0).astype(o_ref.dtype)   # fused ReLU

    return kernel


def f3_forward(x_nchw, weight, bias, *, target_tw=512 * 128):
    """F3.forward: relu(conv1x1(x)). x_nchw: (N, 3, H, W); weight: (3,3,1,1); bias: (3,)."""
    N, C_in, H, W = x_nchw.shape
    C_out = weight.shape[0]
    HW = H * W

    # Free reshape: NCHW -> (N, C, H*W). H*W becomes the lane axis.
    x3d = x_nchw.reshape(N, C_in, HW)
    w2d = weight.reshape(C_out, C_in).astype(jnp.float32)
    b1d = bias.reshape(C_out).astype(jnp.float32)

    # Pixel-tile width: full H*W if it fits a modest block, otherwise a large
    # multiple of 128 (~64K px/channel -> ~768 KiB/input block; x2 buffers of
    # in+out stays well under the 32 MiB scoped VMEM default on all chips).
    if HW <= target_tw:
        tw = HW
    else:
        tw = max(128, (target_tw // 128) * 128)

    grid = (N, pl.cdiv(HW, tw))
    kernel = _make_conv1x1_relu_kernel(C_in, C_out)

    out3d = pl.pallas_call(
        kernel,
        out_shape=jax.ShapeDtypeStruct((N, C_out, HW), x_nchw.dtype),
        grid_spec=pltpu.PrefetchScalarGridSpec(
            num_scalar_prefetch=0,
            grid=grid,
            in_specs=[
                pl.BlockSpec(memory_space=pltpu.MemorySpace.SMEM),     # weight (3,3)
                pl.BlockSpec(memory_space=pltpu.MemorySpace.SMEM),     # bias (3,)
                pl.BlockSpec((1, C_in, tw), lambda n, j: (n, 0, j)),   # pixel tile
            ],
            out_specs=pl.BlockSpec((1, C_out, tw), lambda n, j: (n, 0, j)),
        ),
        compiler_params=pltpu.CompilerParams(
            dimension_semantics=("parallel", "parallel")),
    )(w2d, b1d, x3d)

    # Free reshape back to NCHW.
    return out3d.reshape(N, C_out, H, W)


if __name__ == "__main__":
    # Deterministic parameters matching F3.__init__:
    #   nn.Conv2d(3, 3, 1, 1) with weight == 1, bias == 0.
    weight = jnp.ones((3, 3, 1, 1), dtype=jnp.float32)
    bias = jnp.zeros((3,), dtype=jnp.float32)

    # Deterministic input (N, C, H, W) = (2, 3, 16, 16).
    key = jax.random.PRNGKey(0)
    x = jax.random.normal(key, (2, 3, 16, 16), dtype=jnp.float32)

    out = jax.block_until_ready(f3_forward(x, weight, bias))

    # General reference: y = relu(einsum('oi,nihw->nohw', W, x) + b).
    ref = jnp.einsum("oi,nihw->nohw", weight.reshape(3, 3), x) + bias.reshape(1, 3, 1, 1)
    ref = jnp.maximum(ref, 0.0)
    assert out.shape == (2, 3, 16, 16)
    assert jnp.allclose(out, ref, atol=1e-5), "mismatch vs reference"

    # TODO(synk): the original forward print()s x[:, 0] and out[:, 0] (host-side
    # debug of the in-place ReLU); pure host I/O with no compute, omitted here.
    print("KERNEL_OK")
</pallas_src>

<mosaic_0001>
module attributes {stable_mosaic.version = 11 : i64} {
  func.func @kernel(%arg0: i32, %arg1: i32, %arg2: memref<3x3xf32, #tpu.memory_space<smem>>, %arg3: memref<3xf32, #tpu.memory_space<smem>>, %arg4: memref<1x3x256xf32, #tpu.memory_space<vmem>>, %arg5: memref<1x3x256xf32, #tpu.memory_space<vmem>>) attributes {dimension_semantics = [#tpu.dimension_semantics<parallel>, #tpu.dimension_semantics<parallel>], iteration_bounds = array<i64: 2, 1>, scalar_prefetch = 0 : i64, scratch_operands = 0 : i64, tpu.core_type = #tpu.core_type<tc>, window_params = [{transform_indices = @transform_0, window_bounds = array<i64: 3, 3>}, {transform_indices = @transform_1, window_bounds = array<i64: 3>}, {transform_indices = @transform_2, window_bounds = array<i64: 1, 3, 256>}, {transform_indices = @transform_3, window_bounds = array<i64: 1, 3, 256>}]} {
    %c0 = arith.constant 0 : index
    %c0_0 = arith.constant 0 : index
    %c0_1 = arith.constant 0 : index
    %0 = vector.load %arg4[%c0, %c0_0, %c0_1] : memref<1x3x256xf32, #tpu.memory_space<vmem>>, vector<1x3x256xf32>
    %1 = vector.extract_strided_slice %0 {offsets = [0, 0, 0], sizes = [1, 1, 256], strides = [1, 1, 1]} : vector<1x3x256xf32> to vector<1x1x256xf32>
    %c0_2 = arith.constant 0 : index
    %c0_3 = arith.constant 0 : index
    %2 = memref.load %arg2[%c0_2, %c0_3] : memref<3x3xf32, #tpu.memory_space<smem>>
    %3 = vector.broadcast %2 : f32 to vector<1x1x256xf32>
    %4 = arith.mulf %1, %3 : vector<1x1x256xf32>
    %5 = vector.extract_strided_slice %0 {offsets = [0, 1, 0], sizes = [1, 1, 256], strides = [1, 1, 1]} : vector<1x3x256xf32> to vector<1x1x256xf32>
    %c0_4 = arith.constant 0 : index
    %c1 = arith.constant 1 : index
    %6 = memref.load %arg2[%c0_4, %c1] : memref<3x3xf32, #tpu.memory_space<smem>>
    %7 = vector.broadcast %6 : f32 to vector<1x1x256xf32>
    %8 = arith.mulf %5, %7 : vector<1x1x256xf32>
    %9 = arith.addf %4, %8 : vector<1x1x256xf32>
    %10 = vector.extract_strided_slice %0 {offsets = [0, 2, 0], sizes = [1, 1, 256], strides = [1, 1, 1]} : vector<1x3x256xf32> to vector<1x1x256xf32>
    %c0_5 = arith.constant 0 : index
    %c2 = arith.constant 2 : index
    %11 = memref.load %arg2[%c0_5, %c2] : memref<3x3xf32, #tpu.memory_space<smem>>
    %12 = vector.broadcast %11 : f32 to vector<1x1x256xf32>
    %13 = arith.mulf %10, %12 : vector<1x1x256xf32>
    %14 = arith.addf %9, %13 : vector<1x1x256xf32>
    %c0_6 = arith.constant 0 : index
    %15 = memref.load %arg3[%c0_6] : memref<3xf32, #tpu.memory_space<smem>>
    %16 = vector.broadcast %15 : f32 to vector<1x1x256xf32>
    %17 = arith.addf %14, %16 : vector<1x1x256xf32>
    %18 = vector.extract_strided_slice %0 {offsets = [0, 0, 0], sizes = [1, 1, 256], strides = [1, 1, 1]} : vector<1x3x256xf32> to vector<1x1x256xf32>
    %c1_7 = arith.constant 1 : index
    %c0_8 = arith.constant 0 : index
    %19 = memref.load %arg2[%c1_7, %c0_8] : memref<3x3xf32, #tpu.memory_space<smem>>
    %20 = vector.broadcast %19 : f32 to vector<1x1x256xf32>
    %21 = arith.mulf %18, %20 : vector<1x1x256xf32>
    %22 = vector.extract_strided_slice %0 {offsets = [0, 1, 0], sizes = [1, 1, 256], strides = [1, 1, 1]} : vector<1x3x256xf32> to vector<1x1x256xf32>
    %c1_9 = arith.constant 1 : index
    %c1_10 = arith.constant 1 : index
    %23 = memref.load %arg2[%c1_9, %c1_10] : memref<3x3xf32, #tpu.memory_space<smem>>
    %24 = vector.broadcast %23 : f32 to vector<1x1x256xf32>
    %25 = arith.mulf %22, %24 : vector<1x1x256xf32>
    %26 = arith.addf %21, %25 : vector<1x1x256xf32>
    %27 = vector.extract_strided_slice %0 {offsets = [0, 2, 0], sizes = [1, 1, 256], strides = [1, 1, 1]} : vector<1x3x256xf32> to vector<1x1x256xf32>
    %c1_11 = arith.constant 1 : index
    %c2_12 = arith.constant 2 : index
    %28 = memref.load %arg2[%c1_11, %c2_12] : memref<3x3xf32, #tpu.memory_space<smem>>
    %29 = vector.broadcast %28 : f32 to vector<1x1x256xf32>
    %30 = arith.mulf %27, %29 : vector<1x1x256xf32>
    %31 = arith.addf %26, %30 : vector<1x1x256xf32>
    %c1_13 = arith.constant 1 : index
    %32 = memref.load %arg3[%c1_13] : memref<3xf32, #tpu.memory_space<smem>>
    %33 = vector.broadcast %32 : f32 to vector<1x1x256xf32>
    %34 = arith.addf %31, %33 : vector<1x1x256xf32>
    %35 = vector.extract_strided_slice %0 {offsets = [0, 0, 0], sizes = [1, 1, 256], strides = [1, 1, 1]} : vector<1x3x256xf32> to vector<1x1x256xf32>
    %c2_14 = arith.constant 2 : index
    %c0_15 = arith.constant 0 : index
    %36 = memref.load %arg2[%c2_14, %c0_15] : memref<3x3xf32, #tpu.memory_space<smem>>
    %37 = vector.broadcast %36 : f32 to vector<1x1x256xf32>
    %38 = arith.mulf %35, %37 : vector<1x1x256xf32>
    %39 = vector.extract_strided_slice %0 {offsets = [0, 1, 0], sizes = [1, 1, 256], strides = [1, 1, 1]} : vector<1x3x256xf32> to vector<1x1x256xf32>
    %c2_16 = arith.constant 2 : index
    %c1_17 = arith.constant 1 : index
    %40 = memref.load %arg2[%c2_16, %c1_17] : memref<3x3xf32, #tpu.memory_space<smem>>
    %41 = vector.broadcast %40 : f32 to vector<1x1x256xf32>
    %42 = arith.mulf %39, %41 : vector<1x1x256xf32>
    %43 = arith.addf %38, %42 : vector<1x1x256xf32>
    %44 = vector.extract_strided_slice %0 {offsets = [0, 2, 0], sizes = [1, 1, 256], strides = [1, 1, 1]} : vector<1x3x256xf32> to vector<1x1x256xf32>
    %c2_18 = arith.constant 2 : index
    %c2_19 = arith.constant 2 : index
    %45 = memref.load %arg2[%c2_18, %c2_19] : memref<3x3xf32, #tpu.memory_space<smem>>
    %46 = vector.broadcast %45 : f32 to vector<1x1x256xf32>
    %47 = arith.mulf %44, %46 : vector<1x1x256xf32>
    %48 = arith.addf %43, %47 : vector<1x1x256xf32>
    %c2_20 = arith.constant 2 : index
    %49 = memref.load %arg3[%c2_20] : memref<3xf32, #tpu.memory_space<smem>>
    %50 = vector.broadcast %49 : f32 to vector<1x1x256xf32>
    %51 = arith.addf %48, %50 : vector<1x1x256xf32>
    %52 = tpu.concatenate %17, %34, %51 in 1 : vector<1x1x256xf32>, vector<1x1x256xf32>, vector<1x1x256xf32> -> vector<1x3x256xf32>
    %cst = arith.constant 0.000000e+00 : f32
    %53 = vector.broadcast %cst : f32 to vector<1x3x256xf32>
    %54 = arith.maximumf %52, %53 : vector<1x3x256xf32>
    %c0_21 = arith.constant 0 : index
    %c0_22 = arith.constant 0 : index
    %c0_23 = arith.constant 0 : index
    %55 = vector.load %arg5[%c0_21, %c0_22, %c0_23] : memref<1x3x256xf32, #tpu.memory_space<vmem>>, vector<1x3x256xf32>
    tpu.vector_store %arg5[%c0_21, %c0_22, %c0_23], %54 {strides = array<i32>} : memref<1x3x256xf32, #tpu.memory_space<vmem>>, vector<1x3x256xf32>,
    return
  }
  func.func @transform_0(%arg0: i32, %arg1: i32) -> (i32, i32) {
    %c0_i32 = arith.constant 0 : i32
    %c0_i32_0 = arith.constant 0 : i32
    %c0_i32_1 = arith.constant 0 : i32
    return %c0_i32, %c0_i32_0 : i32, i32
  }
  func.func @transform_1(%arg0: i32, %arg1: i32) -> i32 {
    %c0_i32 = arith.constant 0 : i32
    %c0_i32_0 = arith.constant 0 : i32
    return %c0_i32 : i32
  }
  func.func @transform_2(%arg0: i32, %arg1: i32) -> (i32, i32, i32) {
    %c0_i32 = arith.constant 0 : i32
    %c0_i32_0 = arith.constant 0 : i32
    return %arg0, %c0_i32, %arg1 : i32, i32, i32
  }
  func.func @transform_3(%arg0: i32, %arg1: i32) -> (i32, i32, i32) {
    %c0_i32 = arith.constant 0 : i32
    %c0_i32_0 = arith.constant 0 : i32
    return %arg0, %c0_i32, %arg1 : i32, i32, i32
  }
}

</mosaic_0001>

<llo_original>
// kernel: tpu_custom_call.1
$region0: #{tpu_custom_call.1}
  #allocation0 [shape = 'u32[]', space=smem, size = 0x4, offset = 0x4, fixed_abs, tag = 'smem constant byte address 0x4 - core index']
  #allocation1 [shape = 'u32[72,128]{1,0:T(1,128)}', space=vmem, size = 0x9000, scoped, tag = 'internal scratch']
  %s0 = inlined_call_operand.vmem [shape: f32[3,3], index: 0, kind: input, shape index: {}]
  %s1 = inlined_call_operand.vmem [shape: f32[3], index: 1, kind: input, shape index: {}]
  %s2 = inlined_call_operand.vmem [shape: f32[2,3,256], index: 2, kind: input, shape index: {}]
  %s3 = inlined_call_operand.vmem [shape: f32[2,3,256], index: 3, kind: output, shape index: {}]
  %s4 = sld [smem:[#allocation0]]
  $region53: #{tpu_custom_call.1} parent=0
    _
  %s6 = ssub.s32 1, %s4
  %s7 = scalar_select 0, %s6, %s4
  $region1: #{tpu_custom_call.1} parent=0
    #allocation2 [shape = 'u8[2048]{0}', space=smem, size = 0x800, scoped, tag = 'input window, operand 0, single buffered']
    #allocation3 [shape = 's32[2]{0}', space=sflag, size = 0x8, scoped, tag = 'scoped memory for tpu_custom_call.1']
    #allocation4 [shape = 'u8[512]{0}', space=smem, size = 0x200, scoped, tag = 'input window, operand 1, single buffered']
    #allocation5 [shape = 's32[1]{0}', space=sflag, size = 0x4, scoped, tag = 'scoped memory for tpu_custom_call.1']
    %8 = vsyncpa [#allocation3], 0
    %9 = vsyncpa [#allocation5], 0
    loop: start=0, step=1, limit=4
    $region2: #{tpu_custom_call.1} parent=1 // loop_pre_header
      _
    $region3: #{tpu_custom_call.1} parent=1 // loop_header
      %s11 = sphi 0, %s15
      %p12 = scmp.ge.s32.totalorder %s11, 4
      %s18 = sphi 0, %s30
      %s19 = sphi 0, %s26
      %s20 = sphi 0, %s18
      %s21 = sphi 0, %s19
      %s22 = sphi 0, %s20
      %s23 = sphi 0, %s21
      %s31 = sphi 0, %s31
      %s33 = sphi 0, %s31
      %s34 = sphi 0, %s33
      %s48 = sphi 0, %s34
      %s52 = sphi 0, %s52
      %s54 = sphi 0, %s52
      %s55 = sphi 0, %s54
      %s69 = sphi 0, %s55
      %s77 = sphi 0, %s79
      %s80 = sphi 0, %s77
      %s81 = sphi 0, %s80
      %s97 = sphi 0, %s81
      %s105 = sphi 0, %s107
      %s108 = sphi 0, %s105
      %s109 = sphi 0, %s108
      %s125 = sphi 0, %s109
    $region4: #{tpu_custom_call.1} parent=1 // loop_header_branch
      %14 = sbr.rel (%p12) target = $region8
    $region5: #{tpu_custom_call.1} parent=1 // loop_body
      %s16 = ssub.s32 %s11, 1
      %s17 = ssub.s32 %s11, 2
      %s24 = sadd.s32 1, %s19
      %p25 = scmp.ge.s32.totalorder %s24, 1
      %s26 = scalar_select %p25, 0, %s24
      %s27 = sadd.s32 1, %s18
      %s28 = scalar_select %p25, %s27, %s18
      %p29 = scmp.ge.s32.totalorder %s28, 2
      %s30 = scalar_select %p29, 0, %s28
      %s32 = sadd.s32 %s31, 1
      %p35 = scmp.eq.s32.totalorder %s11, 1
      %p36 = scmp.ne.s32.totalorder %s31, %s33
      %p37 = scmp.eq.s32.totalorder %s11, 0
      %p38 = por %p36, %p37
      %p39 = scmp.ne.s32.totalorder %s31, %s33
      %p40 = scmp.eq.s32.totalorder %s16, 1
      %p41 = por %p39, %p40
      %p42 = scmp.ne.s32.totalorder %s33, %s34
      %p43 = scmp.eq.s32.totalorder %s16, 0
      %p44 = por %p42, %p43
      %p45 = scmp.ne.s32.totalorder %s33, %s34
      %p46 = scmp.eq.s32.totalorder %s17, 1
      %p47 = por %p45, %p46
      %p49 = scmp.ne.s32.totalorder %s34, %s48
      %p50 = scmp.eq.s32.totalorder %s17, 0
      %p51 = por %p49, %p50
      %s53 = sadd.s32 %s52, 1
      %p56 = scmp.eq.s32.totalorder %s11, 1
      %p57 = scmp.ne.s32.totalorder %s52, %s54
      %p58 = scmp.eq.s32.totalorder %s11, 0
      %p59 = por %p57, %p58
      %p60 = scmp.ne.s32.totalorder %s52, %s54
      %p61 = scmp.eq.s32.totalorder %s16, 1
      %p62 = por %p60, %p61
      %p63 = scmp.ne.s32.totalorder %s54, %s55
      %p64 = scmp.eq.s32.totalorder %s16, 0
      %p65 = por %p63, %p64
      %p66 = scmp.ne.s32.totalorder %s54, %s55
      %p67 = scmp.eq.s32.totalorder %s17, 1
      %p68 = por %p66, %p67
      %p70 = scmp.ne.s32.totalorder %s55, %s69
      %p71 = scmp.eq.s32.totalorder %s17, 0
      %p72 = por %p70, %p71
      %s73 = ssub.s32 %s18, %s30
      %s74 = ssub.s32 %s19, %s26
      %s75 = sor.u32 %s73, %s74
      %p76 = scmp.eq.s32.totalorder %s75, 0
      %s78 = sadd.s32 %s77, 1
      %s79 = scalar_select %p76, %s77, %s78
      %p82 = pneg %p76
      %p83 = scmp.eq.s32.totalorder %s11, 1
      %p84 = por %p82, %p83
      %p85 = scmp.ne.s32.totalorder %s77, %s80
      %p86 = scmp.eq.s32.totalorder %s11, 0
      %p87 = por %p85, %p86
      %p88 = scmp.ne.s32.totalorder %s77, %s80
      %p89 = scmp.eq.s32.totalorder %s16, 1
      %p90 = por %p88, %p89
      %p91 = scmp.ne.s32.totalorder %s80, %s81
      %p92 = scmp.eq.s32.totalorder %s16, 0
      %p93 = por %p91, %p92
      %p94 = scmp.ne.s32.totalorder %s80, %s81
      %p95 = scmp.eq.s32.totalorder %s17, 1
      %p96 = por %p94, %p95
      %p98 = scmp.ne.s32.totalorder %s81, %s97
      %p99 = scmp.eq.s32.totalorder %s17, 0
      %p100 = por %p98, %p99
      %s101 = ssub.s32 %s18, %s30
      %s102 = ssub.s32 %s19, %s26
      %s103 = sor.u32 %s101, %s102
      %p104 = scmp.eq.s32.totalorder %s103, 0
      %s106 = sadd.s32 %s105, 1
      %s107 = scalar_select %p104, %s105, %s106
      %p110 = pneg %p104
      %p111 = scmp.eq.s32.totalorder %s11, 1
      %p112 = por %p110, %p111
      %p113 = scmp.ne.s32.totalorder %s105, %s108
      %p114 = scmp.eq.s32.totalorder %s11, 0
      %p115 = por %p113, %p114
      %p116 = scmp.ne.s32.totalorder %s105, %s108
      %p117 = scmp.eq.s32.totalorder %s16, 1
      %p118 = por %p116, %p117
      %p119 = scmp.ne.s32.totalorder %s108, %s109
      %p120 = scmp.eq.s32.totalorder %s16, 0
      %p121 = por %p119, %p120
      %p122 = scmp.ne.s32.totalorder %s108, %s109
      %p123 = scmp.eq.s32.totalorder %s17, 1
      %p124 = por %p122, %p123
      %p126 = scmp.ne.s32.totalorder %s109, %s125
      %p127 = scmp.eq.s32.totalorder %s17, 0
      %p128 = por %p126, %p127
      %p129 = scmp.le.s32.totalorder 1, %s11
      %p130 = scmp.lt.s32.totalorder %s11, 3
      %p131 = pnand %p129, %p130
      %p132 = pneg %p131
      // Predicated region
      $region9: #{tpu_custom_call.1} parent=5 // pred_check
        _
      $region10: #{tpu_custom_call.1} parent=5 // pred_check_branch
        %134 = sbr.rel (%p131) target = $region12
      $region11: #{tpu_custom_call.1} parent=5 // pred_region
        %s135 = ssub.s32 %s11, 1
        // Predicated region
        $region13: #{tpu_custom_call.1} parent=11 // pred_check
          %p136 = pneg %p44
        $region14: #{tpu_custom_call.1} parent=11 // pred_check_branch
          %138 = sbr.rel (%p136) target = $region16
        $region15: #{tpu_custom_call.1} parent=11 // pred_region
          %140 = vsyncadd [#allocation3], 0
          %s142 = sshll.u32 %s0, 4
          %s143 = int_to_ptr.vmem [resolvable:$true] %s142
          %145 = dma.vmem_to_smem %s143, 64, [#allocation2], [#allocation3]
        $region16: #{tpu_custom_call.1} parent=11 // pred_fallthru
          _
        // Predicated region
        $region17: #{tpu_custom_call.1} parent=11 // pred_check
          %p146 = pneg %p65
        $region18: #{tpu_custom_call.1} parent=11 // pred_check_branch
          %148 = sbr.rel (%p146) target = $region20
        $region19: #{tpu_custom_call.1} parent=11 // pred_region
          %150 = vsyncadd [#allocation5], 0
          %s152 = sshll.u32 %s1, 4
          %s153 = int_to_ptr.vmem [resolvable:$true] %s152
          %155 = dma.vmem_to_smem %s153, 16, [#allocation4], [#allocation5]
        $region20: #{tpu_custom_call.1} parent=11 // pred_fallthru
          _
      $region12: #{tpu_custom_call.1} parent=5 // pred_fallthru
        _
      %p156 = scmp.lt.s32.totalorder %s11, 2
      // Predicated region
      $region21: #{tpu_custom_call.1} parent=5 // pred_check
        %p157 = pneg %p156
      $region22: #{tpu_custom_call.1} parent=5 // pred_check_branch
        %159 = sbr.rel (%p157) target = $region24
      $region23: #{tpu_custom_call.1} parent=5 // pred_region
        // Predicated region
        $region25: #{tpu_custom_call.1} parent=23 // pred_check
          %p160 = pneg %p87
        $region26: #{tpu_custom_call.1} parent=23 // pred_check_branch
          %162 = sbr.rel (%p160) target = $region28
        $region27: #{tpu_custom_call.1} parent=23 // pred_region
          %s163 = smul.u32 2, %s19
          %p164 = scmp.lt.s32.totalorder %s18, 1
          %s165 = scalar_select %p164, %s18, 1
          %p166 = scmp.lt.s32.totalorder %s163, 1
          %s167 = scalar_select %p166, %s163, 1
          %s168 = smul.addr %s165, 2
          %s169 = sadd.s32 %s167, %s168
          %s170 = smul.addr %s169, 4
          %s171 = scalar_lea.vmem %s2, %s170
          %s172 = smul.u32 2, %s19
        $region28: #{tpu_custom_call.1} parent=23 // pred_fallthru
          _
      $region24: #{tpu_custom_call.1} parent=5 // pred_fallthru
        _
      %p173 = scmp.le.s32.totalorder 1, %s11
      %p174 = scmp.lt.s32.totalorder %s11, 3
      %p175 = pnand %p173, %p174
      %p176 = pneg %p175
      // Predicated region
      $region29: #{tpu_custom_call.1} parent=5 // pred_check
        _
      $region30: #{tpu_custom_call.1} parent=5 // pred_check_branch
        %178 = sbr.rel (%p175) target = $region32
      $region31: #{tpu_custom_call.1} parent=5 // pred_region
        %s179 = ssub.s32 %s11, 1
        // Predicated region
        $region33: #{tpu_custom_call.1} parent=31 // pred_check
          %p180 = pneg %p44
        $region34: #{tpu_custom_call.1} parent=31 // pred_check_branch
          %182 = sbr.rel (%p180) target = $region36
        $region35: #{tpu_custom_call.1} parent=31 // pred_region
          %184 = dma.done [#allocation3], 64
        $region36: #{tpu_custom_call.1} parent=31 // pred_fallthru
          _
        // Predicated region
        $region37: #{tpu_custom_call.1} parent=31 // pred_check
          %p185 = pneg %p65
        $region38: #{tpu_custom_call.1} parent=31 // pred_check_branch
          %187 = sbr.rel (%p185) target = $region40
        $region39: #{tpu_custom_call.1} parent=31 // pred_region
          %189 = dma.done [#allocation5], 16
        $region40: #{tpu_custom_call.1} parent=31 // pred_fallthru
          _
        %190 = sfence
        %p191 = pneg %p44
        %p192 = pneg %p41
        %p193 = pneg %p65
        %p194 = pneg %p62
        %s195 = smul.u32 2, %s21
        %p196 = scmp.lt.s32.totalorder %s20, 1
        %s197 = scalar_select %p196, %s20, 1
        %p198 = scmp.lt.s32.totalorder %s195, 1
        %s199 = scalar_select %p198, %s195, 1
        %s200 = smul.addr %s197, 2
        %s201 = sadd.s32 %s199, %s200
        %s202 = smul.addr %s201, 4
        %s203 = scalar_lea.vmem %s2, %s202
        %p204 = pneg %p93
        %p205 = pneg %p90
        %p206 = pneg %p121
        %p207 = pneg %p118
        %s208 = smul.u32 2, %s21
        %p209 = scmp.lt.s32.totalorder %s20, 1
        %s210 = scalar_select %p209, %s20, 1
        %p211 = scmp.lt.s32.totalorder %s208, 1
        %s212 = scalar_select %p211, %s208, 1
        %s213 = smul.addr %s210, 2
        %s214 = sadd.s32 %s212, %s213
        %s215 = smul.addr %s214, 4
        %s216 = scalar_lea.vmem %s3, %s215
        %s217 = smul.u32 2, %s21
        %p218 = scmp.lt.s32.totalorder %s20, 1
        %s219 = scalar_select %p218, %s20, 1
        %p220 = scmp.lt.s32.totalorder %s217, 1
        %s221 = scalar_select %p220, %s217, 1
        %s222 = smul.addr %s219, 2
        %s223 = sadd.s32 %s221, %s222
        %s224 = smul.addr %s223, 4
        %s225 = scalar_lea.vmem %s2, %s224
        %s226 = smul.u32 2, %s21
        %s227 = smul.u32 2, %s21
        %p228 = scmp.lt.s32.totalorder %s20, 1
        %s229 = scalar_select %p228, %s20, 1
        %p230 = scmp.lt.s32.totalorder %s227, 1
        %s231 = scalar_select %p230, %s227, 1
        %s232 = smul.addr %s229, 2
        %s233 = sadd.s32 %s231, %s232
        %s234 = smul.addr %s233, 4
        %s235 = scalar_lea.vmem %s3, %s234
        %s236 = smul.u32 2, %s21
        %v237 = vld [vmem:[%s225] sm:$0x77]
        %s238 = sld [smem:[#allocation2]]
        %v239 = vstv %s238
        %v240 = vmul.f32 %v237, %v239
        %s241 = sld [smem:[#allocation2 + $0x1]]
        %v242 = vstv %s241
        %v243 = vmul.f32 %v237, %v242
        %v245 = vrot.slane %v243, 5
        %v246 = vrot.slane %v245, 4
        %v248 = vadd.f32 %v240, %v246
        %s249 = sld [smem:[#allocation2 + $0x2]]
        %v250 = vstv %s249
        %v251 = vmul.f32 %v237, %v250
        %v253 = vrot.slane %v251, 6
        %v254 = vrot.slane %v253, 4
        %v256 = vadd.f32 %v248, %v254
        %s257 = sld [smem:[#allocation4]]
        %v258 = vstv %s257
        %v259 = vadd.f32 %v256, %v258
        %s260 = sld [smem:[#allocation2 + $0x80]]
        %v261 = vstv %s260
        %v262 = vmul.f32 %v237, %v261
        %s263 = sld [smem:[#allocation2 + $0x81]]
        %v264 = vstv %s263
        %v265 = vmul.f32 %v237, %v264
        %v267 = vrot.slane %v265, 5
        %v268 = vrot.slane %v267, 4
        %v270 = vadd.f32 %v262, %v268
        %s271 = sld [smem:[#allocation2 + $0x82]]
        %v272 = vstv %s271
        %v273 = vmul.f32 %v237, %v272
        %v275 = vrot.slane %v273, 6
        %v276 = vrot.slane %v275, 4
        %v278 = vadd.f32 %v270, %v276
        %s279 = sld [smem:[#allocation4 + $0x1]]
        %v280 = vstv %s279
        %v281 = vadd.f32 %v278, %v280
        %s282 = sld [smem:[#allocation2 + $0x100]]
        %v283 = vstv %s282
        %v284 = vmul.f32 %v237, %v283
        %s285 = sld [smem:[#allocation2 + $0x101]]
        %v286 = vstv %s285
        %v287 = vmul.f32 %v237, %v286
        %v289 = vrot.slane %v287, 5
        %v290 = vrot.slane %v289, 4
        %v292 = vadd.f32 %v284, %v290
        %s293 = sld [smem:[#allocation2 + $0x102]]
        %v294 = vstv %s293
        %v295 = vmul.f32 %v237, %v294
        %v297 = vrot.slane %v295, 6
        %v298 = vrot.slane %v297, 4
        %v300 = vadd.f32 %v292, %v298
        %s301 = sld [smem:[#allocation4 + $0x2]]
        %v302 = vstv %s301
        %v303 = vadd.f32 %v300, %v302
        %v305 = vperm.slane %v259, 0
        %v306 = vperm.slane %v259, 4
        %v310 = vperm.slane %v281, 0
        %v311 = vperm.slane %v281, 4
        %v315 = vperm.slane %v303, 0
        %v316 = vperm.slane %v303, 4
        %vm319 = vcmask 1040384
        %v320 = vsel %vm319, %v305, %v310
        %v321 = vsel %vm319, %v306, %v311
        %vm322 = vcmask 1041408
        %v323 = vsel %vm322, %v320, %v315
        %v324 = vsel %vm322, %v321, %v316
        %v325 = vmax.f32 %v323, 0.0
        %v326 = vmax.f32 %v324, 0.0
        %v329 = vrot.slane %v326, 4
        %vm330 = vcmask 1043456
        %v331 = vsel %vm330, %v325, %v329
        %333 = vst [vmem:[%s235] sm:$0x77] %v331
        %s334 = smul.u32 2, %s21
        %p335 = scmp.lt.s32.totalorder %s20, 1
        %s336 = scalar_select %p335, %s20, 1
        %p337 = scmp.lt.s32.totalorder %s334, 1
        %s338 = scalar_select %p337, %s334, 1
        %s339 = smul.addr %s336, 2
        %s340 = sadd.s32 %s338, %s339
        %s341 = smul.addr %s340, 4
        %s342 = scalar_lea.vmem %s3, %s341
        // Predicated region
        $region41: #{tpu_custom_call.1} parent=31 // pred_check
          %p343 = pneg %p118
        $region42: #{tpu_custom_call.1} parent=31 // pred_check_branch
          %345 = sbr.rel (%p343) target = $region44
        $region43: #{tpu_custom_call.1} parent=31 // pred_region
          %s346 = smul.u32 2, %s21
        $region44: #{tpu_custom_call.1} parent=31 // pred_fallthru
          _
      $region32: #{tpu_custom_call.1} parent=5 // pred_fallthru
        _
      %p347 = scmp.le.s32.totalorder 2, %s11
      // Predicated region
      $region45: #{tpu_custom_call.1} parent=5 // pred_check
        %p348 = pneg %p347
      $region46: #{tpu_custom_call.1} parent=5 // pred_check_branch
        %350 = sbr.rel (%p348) target = $region48
      $region47: #{tpu_custom_call.1} parent=5 // pred_region
        %s351 = ssub.s32 %s11, 2
        // Predicated region
        $region49: #{tpu_custom_call.1} parent=47 // pred_check
          %p352 = pneg %p124
        $region50: #{tpu_custom_call.1} parent=47 // pred_check_branch
          %354 = sbr.rel (%p352) target = $region52
        $region51: #{tpu_custom_call.1} parent=47 // pred_region
          %s355 = smul.u32 2, %s23
          %p356 = scmp.lt.s32.totalorder %s22, 1
          %s357 = scalar_select %p356, %s22, 1
          %p358 = scmp.lt.s32.totalorder %s355, 1
          %s359 = scalar_select %p358, %s355, 1
          %s360 = smul.addr %s357, 2
          %s361 = sadd.s32 %s359, %s360
          %s362 = smul.addr %s361, 4
          %s363 = scalar_lea.vmem %s3, %s362
        $region52: #{tpu_custom_call.1} parent=47 // pred_fallthru
          _
      $region48: #{tpu_custom_call.1} parent=5 // pred_fallthru
        _
    $region6: #{tpu_custom_call.1} parent=1 // loop_footer
      %s15 = sadd.s32 1, %s11
    $region7: #{tpu_custom_call.1} parent=1 // loop_footer_branch
      %10 = sbr.rel target = $region3
    $region8: #{tpu_custom_call.1} parent=1 // loop_exit
      _
    %364 = vsyncpa [#allocation3], 1
    %s365 = scalar_lea.sflag [#allocation3], 1
    %366 = vsyncpa %s365, 1
    %367 = vsyncpa [#allocation5], 1

</llo_original>
